<compile_context>
chip_gen: v7x
topology: tpu7x:2x2x1
jax: 0.10.0
libtpu: 0.0.40
codegen_flags: <defaults>
</compile_context>

<pallas_src>
import functools
import math

import jax
import jax.numpy as jnp
from jax import lax
from jax.experimental import pallas as pl
from jax.experimental.pallas import tpu as pltpu

_BF16 = jnp.bfloat16


# ---------------------------------------------------------------------------
# Pallas kernels
# ---------------------------------------------------------------------------

def _layer_norm(x, g, b):
    mu = jnp.mean(x, axis=-1, keepdims=True)
    var = jnp.mean(jnp.square(x - mu), axis=-1, keepdims=True)
    return (x - mu) * lax.rsqrt(var + 1e-5) * g + b


def _downsample_ln_mask_kernel(p_ref, m_ref, w_ref, g_ref, b_ref, mt_ref, o_ref):
    """Strided conv as non-overlapping-patch matmul (bf16 MXU) + LayerNorm (f32)
    + token-mask replacement, fused.  Runs once over all N*Ho*Wo tokens."""
    y = jnp.dot(p_ref[...].astype(_BF16), w_ref[...],
                preferred_element_type=jnp.float32)
    y = _layer_norm(y, g_ref[...], b_ref[...])
    m = m_ref[...]                                 # (M, C) f32 in {0, 1}
    o_ref[...] = y + m * (mt_ref[...] - y)         # where(mask, mask_token, y)


def _sast_block_kernel(x_ref, pos_ref,
                       ln1_g_ref, ln1_b_ref,
                       wq_ref, bq_ref, wk_ref, bk_ref, wv_ref, bv_ref,
                       wo_ref, bo_ref,
                       ln2_g_ref, ln2_b_ref,
                       w1_ref, b1_ref, w2_ref, b2_ref,
                       o_ref, *, num_heads, batch):
    """One full pre-LN transformer block, all batch elements + heads in one
    program, everything VMEM-resident.

    TODO(synk): SAST_block's sparse token selection / p_loss is not defined in
    the reference; this is a dense MHSA (sine pos on q/k) + MLP stand-in.
    TODO(synk): for production L, add a query-tile grid axis with flash-style
    online softmax (the dense (H*N, L, L) score tensor does not scale to v7x's
    64 MiB VMEM at real RVT token counts).
    """
    x = x_ref[...]                                 # (N*L, C) f32 residual stream
    NL, C = x.shape
    H = num_heads
    N = batch
    L = NL // N
    Dh = C // H

    # ---- pre-LN + head-batched Q/K/V projections (weights head-major) ----
    xn = _layer_norm(x, ln1_g_ref[...], ln1_b_ref[...])
    xp_bf = (xn + pos_ref[...]).astype(_BF16)
    xn_bf = xn.astype(_BF16)

    dn_proj = (((2,), (1,)), ((0,), (0,)))         # batched (.., C) @ (C, Dh)
    xp_b = jnp.broadcast_to(xp_bf[None], (H, NL, C))
    xn_b = jnp.broadcast_to(xn_bf[None], (H, NL, C))
    # 1/sqrt(Dh) scale already folded into wq/bq at init.
    q = lax.dot_general(xp_b, wq_ref[...], dn_proj,
                        preferred_element_type=jnp.float32) + bq_ref[...]
    k = lax.dot_general(xp_b, wk_ref[...], dn_proj,
                        preferred_element_type=jnp.float32) + bk_ref[...]
    v = lax.dot_general(xn_b, wv_ref[...], dn_proj,
                        preferred_element_type=jnp.float32) + bv_ref[...]

    # (H, N*L, Dh) -> (H*N, L, Dh): tile-aligned reshape, keeps batches separate.
    q_hb = q.reshape(H * N, L, Dh).astype(_BF16)
    k_hb = k.reshape(H * N, L, Dh).astype(_BF16)
    v_hb = v.reshape(H * N, L, Dh).astype(_BF16)

    # ---- head/batch-batched attention ----
    dn_qkT = (((2,), (2,)), ((0,), (0,)))
    s = lax.dot_general(q_hb, k_hb, dn_qkT,
                        preferred_element_type=jnp.float32)    # (H*N, L, L)
    s = s - jnp.max(s, axis=-1, keepdims=True)
    p = jnp.exp(s)
    # approx reciprocal (EUP slot); switch to approx=False for parity tests.
    p = p * pl.reciprocal(jnp.sum(p, axis=-1, keepdims=True), approx=True)

    dn_pv = (((2,), (1,)), ((0,), (0,)))
    att = lax.dot_general(p.astype(_BF16), v_hb, dn_pv,
                          preferred_element_type=jnp.float32)  # (H*N, L, Dh)

    # ---- output projection (head-batched) + residual ----
    att_h = att.reshape(H, NL, Dh).astype(_BF16)
    proj = lax.dot_general(att_h, wo_ref[...], dn_proj,
                           preferred_element_type=jnp.float32)  # (H, NL, C)
    x = x + jnp.sum(proj, axis=0) + bo_ref[...]    # head-sum = cheap VPU adds

    # ---- MLP (exact erf GELU, matching torch.nn.GELU()) + residual ----
    xn2 = _layer_norm(x, ln2_g_ref[...], ln2_b_ref[...])
    h1 = jnp.dot(xn2.astype(_BF16), w1_ref[...],
                 preferred_element_type=jnp.float32) + b1_ref[...]
    h1 = 0.5 * h1 * (1.0 + lax.erf(h1 * (1.0 / math.sqrt(2.0))))
    x = x + jnp.dot(h1.astype(_BF16), w2_ref[...],
                    preferred_element_type=jnp.float32) + b2_ref[...]

    o_ref[...] = x


def _lstm_gates_kernel(x_ref, h_ref, c_ref, wx_ref, wh_ref, b_ref,
                       h_out_ref, c_out_ref):
    """Fused 1x1-conv gate projection (two matmuls, x and h kept as separate
    refs -> no HBM concat) + ConvLSTM cell update.  Sigmoid only on the
    contiguous (f, i, o) block, tanh only on g.

    TODO(synk): (f, i, o, g) gate ordering assumed; verify vs DWSConvLSTM2d.
    """
    C = c_ref.shape[-1]
    mix = (jnp.dot(x_ref[...].astype(_BF16), wx_ref[...],
                   preferred_element_type=jnp.float32)
           + jnp.dot(h_ref[...].astype(_BF16), wh_ref[...],
                     preferred_element_type=jnp.float32)
           + b_ref[...])
    sg = jax.nn.sigmoid(mix[:, :3 * C])
    g = jnp.tanh(mix[:, 3 * C:])
    f_g = sg[:, 0:C]
    i_g = sg[:, C:2 * C]
    o_g = sg[:, 2 * C:3 * C]
    c_t = f_g * c_ref[...] + i_g * g
    h_out_ref[...] = o_g * jnp.tanh(c_t)
    c_out_ref[...] = c_t


# ---------------------------------------------------------------------------
# pallas_call wrappers (single program, no per-batch grid)
# ---------------------------------------------------------------------------

def _fs(shape):
    nd = len(shape)
    return pl.BlockSpec(shape, lambda i: (0,) * nd)


def pallas_downsample_ln_mask(patches, w_bf, gamma, beta, mask_bc, mask_token):
    M, K = patches.shape
    C = w_bf.shape[1]
    return pl.pallas_call(
        _downsample_ln_mask_kernel,
        out_shape=jax.ShapeDtypeStruct((M, C), jnp.float32),
        grid=(1,),
        in_specs=[_fs((M, K)), _fs((M, C)), _fs((K, C)),
                  _fs((1, C)), _fs((1, C)), _fs((1, C))],
        out_specs=_fs((M, C)),
    )(patches, mask_bc, w_bf, gamma, beta, mask_token)


def pallas_sast_block(x_tok, pos_tok_b, blk, num_heads, batch):
    NL, C = x_tok.shape
    H = num_heads
    Dh = C // H
    hidden = blk["w1"].shape[1]
    return pl.pallas_call(
        functools.partial(_sast_block_kernel, num_heads=H, batch=batch),
        out_shape=jax.ShapeDtypeStruct((NL, C), jnp.float32),
        grid=(1,),
        in_specs=[_fs((NL, C)), _fs((NL, C)),
                  _fs((1, C)), _fs((1, C)),
                  _fs((H, C, Dh)), _fs((H, 1, Dh)),
                  _fs((H, C, Dh)), _fs((H, 1, Dh)),
                  _fs((H, C, Dh)), _fs((H, 1, Dh)),
                  _fs((H, Dh, C)), _fs((1, C)),
                  _fs((1, C)), _fs((1, C)),
                  _fs((C, hidden)), _fs((1, hidden)),
                  _fs((hidden, C)), _fs((1, C))],
        out_specs=_fs((NL, C)),
        compiler_params=pltpu.CompilerParams(vmem_limit_bytes=32 * 1024 * 1024),
    )(x_tok, pos_tok_b,
      blk["ln1_g"], blk["ln1_b"],
      blk["wq"], blk["bq"], blk["wk"], blk["bk"], blk["wv"], blk["bv"],
      blk["wo"], blk["bo"],
      blk["ln2_g"], blk["ln2_b"],
      blk["w1"], blk["b1"], blk["w2"], blk["b2"])


def pallas_lstm_gates(x_tok, h_tok, c_tok, wx, wh, b):
    M, C = x_tok.shape
    G = wx.shape[1]
    return pl.pallas_call(
        _lstm_gates_kernel,
        out_shape=(jax.ShapeDtypeStruct((M, C), jnp.float32),
                   jax.ShapeDtypeStruct((M, C), jnp.float32)),
        grid=(1,),
        in_specs=[_fs((M, C)), _fs((M, C)), _fs((M, C)),
                  _fs((C, G)), _fs((C, G)), _fs((1, G))],
        out_specs=(_fs((M, C)), _fs((M, C))),
    )(x_tok, h_tok, c_tok, wx, wh, b)


# ---------------------------------------------------------------------------
# Plain-JAX glue reproducing module semantics
# ---------------------------------------------------------------------------

def position_embedding_sine(input_size, num_pos_feats, temperature=10000.0,
                            normalize=True, scale=2.0 * math.pi):
    """Exact port of PositionEmbeddingSine.generate_position_embedding."""
    B, H, W = input_size
    ones = jnp.ones((B, H, W), jnp.float32)
    y_embed = jnp.cumsum(ones, axis=1)
    x_embed = jnp.cumsum(ones, axis=2)
    if normalize:
        eps = 1e-6
        y_embed = (y_embed - 0.5) / (y_embed[:, -1:, :] + eps) * scale
        x_embed = (x_embed - 0.5) / (x_embed[:, :, -1:] + eps) * scale
    dim_t = jnp.arange(num_pos_feats, dtype=jnp.float32)
    dim_t = temperature ** (2.0 * (dim_t // 2) / num_pos_feats)
    pos_x = x_embed[:, :, :, None] / dim_t
    pos_y = y_embed[:, :, :, None] / dim_t
    pos_x = jnp.stack((jnp.sin(pos_x[..., 0::2]), jnp.cos(pos_x[..., 1::2])),
                      axis=4).reshape(B, H, W, -1)
    pos_y = jnp.stack((jnp.sin(pos_y[..., 0::2]), jnp.cos(pos_y[..., 1::2])),
                      axis=4).reshape(B, H, W, -1)
    return jnp.concatenate((pos_y, pos_x), axis=3)


def rnn_detector_stage_forward(params, x_nchw, h_and_c_previous=None,
                               token_mask=None, r=None, stage_idx=0,
                               overload_size=(1, 8, 8)):
    N, Cin, Hi, Wi = x_nchw.shape
    ds = params["downsample_factor"]
    C = params["stage_dim"]
    Ho, Wo = Hi // ds, Wi // ds
    L = Ho * Wo
    M = N * L

    # downsample_cf2cl: strided conv == non-overlapping patch matmul + LN + mask.
    # TODO(synk): patch gather kept in XLA; fold into the kernel via index_map
    # gather at production resolutions to avoid the extra HBM pass.
    patches = (x_nchw.reshape(N, Cin, Ho, ds, Wo, ds)
               .transpose(0, 2, 4, 1, 3, 5)       # PyTorch (C, kh, kw) weight order
               .reshape(M, Cin * ds * ds))

    if token_mask is not None:
        assert params["mask_token"] is not None, "No mask token present in this stage"
        mask_bc = jnp.broadcast_to(
            token_mask.reshape(M, 1).astype(jnp.float32), (M, C))
        mask_token = params["mask_token"].reshape(1, C)
    else:
        mask_bc = jnp.zeros((M, C), jnp.float32)
        mask_token = jnp.zeros((1, C), jnp.float32)

    x_tok = pallas_downsample_ln_mask(patches, params["ds_w"],
                                      params["ds_gamma"], params["ds_beta"],
                                      mask_bc, mask_token)

    # sine positional embedding, generated at overload_size then sliced
    # (matches PositionEmbeddingSine), tiled over batch at trace time.
    pos_full = position_embedding_sine(overload_size, C // 2)
    pos_tok = pos_full[0, :Ho, :Wo, :].reshape(L, C)
    pos_tok_b = jnp.broadcast_to(pos_tok[None], (N, L, C)).reshape(M, C)

    P = jnp.float32(0.0)
    for blk in params["blocks"]:
        x_tok = pallas_sast_block(x_tok, pos_tok_b, blk,
                                  params["num_heads"], batch=N)
        # TODO(synk): SAST p_loss / sparse token selection undefined in spec.

    if params["lstm"] is not None:
        lp = params["lstm"]
        if h_and_c_previous is None or h_and_c_previous[0] is None:
            h_tok = jnp.zeros((M, C), jnp.float32)
            c_tok = jnp.zeros((M, C), jnp.float32)
        else:
            h_prev, c_prev = h_and_c_previous      # NCHW module contract
            h_tok = jnp.transpose(h_prev, (0, 2, 3, 1)).reshape(M, C)
            c_tok = jnp.transpose(c_prev, (0, 2, 3, 1)).reshape(M, C)
        # depthwise 3x3 on the hidden state in NHWC (token layout is a free
        # reshape away; no NCHW transposes between pallas_calls).
        h_nhwc = h_tok.reshape(N, Ho, Wo, C)
        hconv = lax.conv_general_dilated(
            h_nhwc, lp["dws_w"], window_strides=(1, 1), padding="SAME",
            dimension_numbers=("NHWC", "HWIO", "NHWC"),
            feature_group_count=C) + lp["dws_b"].reshape(1, 1, 1, C)
        h_t_tok, c_t_tok = pallas_lstm_gates(
            x_tok, hconv.reshape(M, C), c_tok, lp["wx"], lp["wh"], lp["b"])
        h_t = jnp.transpose(h_t_tok.reshape(N, Ho, Wo, C), (0, 3, 1, 2))
        c_t = jnp.transpose(c_t_tok.reshape(N, Ho, Wo, C), (0, 3, 1, 2))
        return h_t, (h_t, c_t), P

    x_cf = jnp.transpose(x_tok.reshape(N, Ho, Wo, C), (0, 3, 1, 2))
    return x_cf, (x_cf, x_cf), P


# ---------------------------------------------------------------------------
# Deterministic parameter init (synthetic, matching the module's shapes).
# MXU weights stored in bf16 once; attention scale folded into wq/bq.
# ---------------------------------------------------------------------------

def init_params(key, *, dim_in, stage_dim, downsample_factor, num_blocks,
                num_heads, mlp_ratio=4, enable_lstm=True,
                enable_token_masking=True, dws_conv_kernel_size=3):
    keys = iter(jax.random.split(key, 128))

    def nrm(shape, std=0.02, dtype=jnp.float32):
        return (std * jax.random.normal(next(keys), shape, jnp.float32)).astype(dtype)

    C = stage_dim
    H = num_heads
    Dh = C // H
    Kd = dim_in * downsample_factor * downsample_factor
    scale = 1.0 / math.sqrt(Dh)

    params = dict(
        stage_dim=C,
        downsample_factor=downsample_factor,
        num_heads=H,
        ds_w=nrm((Kd, C), dtype=_BF16),             # strided conv weight (bias=False)
        ds_gamma=jnp.ones((1, C), jnp.float32),
        ds_beta=jnp.zeros((1, C), jnp.float32),
        mask_token=(nrm((1, 1, 1, C)) if enable_token_masking else None),
    )
    hidden = mlp_ratio * C
    blocks = []
    for _ in range(num_blocks):
        wq = nrm((H, C, Dh))
        blocks.append(dict(
            ln1_g=jnp.ones((1, C), jnp.float32), ln1_b=jnp.zeros((1, C), jnp.float32),
            wq=(wq * scale).astype(_BF16),           # 1/sqrt(Dh) folded in
            bq=jnp.zeros((H, 1, Dh), jnp.float32),
            wk=nrm((H, C, Dh), dtype=_BF16), bk=jnp.zeros((H, 1, Dh), jnp.float32),
            wv=nrm((H, C, Dh), dtype=_BF16), bv=jnp.zeros((H, 1, Dh), jnp.float32),
            wo=nrm((H, Dh, C), dtype=_BF16), bo=jnp.zeros((1, C), jnp.float32),
            ln2_g=jnp.ones((1, C), jnp.float32), ln2_b=jnp.zeros((1, C), jnp.float32),
            w1=nrm((C, hidden), dtype=_BF16), b1=jnp.zeros((1, hidden), jnp.float32),
            w2=nrm((hidden, C), dtype=_BF16), b2=jnp.zeros((1, C), jnp.float32),
        ))
    params["blocks"] = blocks
    if enable_lstm:
        params["lstm"] = dict(
            dws_w=nrm((dws_conv_kernel_size, dws_conv_kernel_size, 1, C)),
            dws_b=jnp.zeros((C,), jnp.float32),
            wx=nrm((C, 4 * C), dtype=_BF16),
            wh=nrm((C, 4 * C), dtype=_BF16),
            b=jnp.zeros((1, 4 * C), jnp.float32),
        )
    else:
        params["lstm"] = None
    return params


# ---------------------------------------------------------------------------

if __name__ == "__main__":
    key = jax.random.PRNGKey(0)
    k_x, k_p, k_m = jax.random.split(key, 3)

    N, dim_in, H, W = 2, 4, 16, 16
    stage_dim, ds_factor = 32, 2
    Ho, Wo = H // ds_factor, W // ds_factor

    params = init_params(k_p, dim_in=dim_in, stage_dim=stage_dim,
                         downsample_factor=ds_factor, num_blocks=1,
                         num_heads=4, mlp_ratio=4,
                         enable_lstm=True, enable_token_masking=True)

    x = jax.random.normal(k_x, (N, dim_in, H, W), jnp.float32)
    token_mask = jax.random.uniform(k_m, (N, Ho, Wo)) < 0.1

    out, (h_t, c_t), P = rnn_detector_stage_forward(
        params, x, h_and_c_previous=None, token_mask=token_mask,
        overload_size=(1, Ho, Wo))

    jax.block_until_ready((out, h_t, c_t, P))
    assert out.shape == (N, stage_dim, Ho, Wo)
    assert h_t.shape == out.shape and c_t.shape == out.shape
    assert bool(jnp.all(jnp.isfinite(out)))
    print("KERNEL_OK")
</pallas_src>

<mosaic_0001>
module attributes {stable_mosaic.version = 11 : i64} {
  func.func @_downsample_ln_mask_kernel(%arg0: i32, %arg1: memref<128x16xf32, #tpu.memory_space<vmem>>, %arg2: memref<128x32xf32, #tpu.memory_space<vmem>>, %arg3: memref<16x32xbf16, #tpu.memory_space<vmem>>, %arg4: memref<1x32xf32, #tpu.memory_space<vmem>>, %arg5: memref<1x32xf32, #tpu.memory_space<vmem>>, %arg6: memref<1x32xf32, #tpu.memory_space<vmem>>, %arg7: memref<128x32xf32, #tpu.memory_space<vmem>>) attributes {dimension_semantics = [#tpu.dimension_semantics<arbitrary>], iteration_bounds = array<i64: 1>, scalar_prefetch = 0 : i64, scratch_operands = 0 : i64, tpu.core_type = #tpu.core_type<tc>, window_params = [{pipeline_mode = #tpu.pipeline_mode<synchronous>, transform_indices = @transform_0, window_bounds = array<i64: 128, 16>}, {pipeline_mode = #tpu.pipeline_mode<synchronous>, transform_indices = @transform_1, window_bounds = array<i64: 128, 32>}, {pipeline_mode = #tpu.pipeline_mode<synchronous>, transform_indices = @transform_2, window_bounds = array<i64: 16, 32>}, {pipeline_mode = #tpu.pipeline_mode<synchronous>, transform_indices = @transform_3, window_bounds = array<i64: 1, 32>}, {pipeline_mode = #tpu.pipeline_mode<synchronous>, transform_indices = @transform_4, window_bounds = array<i64: 1, 32>}, {pipeline_mode = #tpu.pipeline_mode<synchronous>, transform_indices = @transform_5, window_bounds = array<i64: 1, 32>}, {pipeline_mode = #tpu.pipeline_mode<synchronous>, transform_indices = @transform_6, window_bounds = array<i64: 128, 32>}]} {
    %c0 = arith.constant 0 : index
    %c0_0 = arith.constant 0 : index
    %0 = vector.load %arg1[%c0, %c0_0] : memref<128x16xf32, #tpu.memory_space<vmem>>, vector<128x16xf32>
    %1 = arith.truncf %0 : vector<128x16xf32> to vector<128x16xbf16>
    %c0_1 = arith.constant 0 : index
    %c0_2 = arith.constant 0 : index
    %2 = vector.load %arg3[%c0_1, %c0_2] : memref<16x32xbf16, #tpu.memory_space<vmem>>, vector<16x32xbf16>
    %cst = arith.constant dense<0.000000e+00> : vector<128x32xf32>
    %3 = tpu.matmul %1, %2, %cst {dimension_numbers = #tpu.dot_dimension_numbers<[1], [0], [0], [1], [0, 0, 1, 1], [], []>} : vector<128x16xbf16>, vector<16x32xbf16>, vector<128x32xf32> -> vector<128x32xf32>
    %c0_3 = arith.constant 0 : index
    %c0_4 = arith.constant 0 : index
    %4 = vector.load %arg4[%c0_3, %c0_4] : memref<1x32xf32, #tpu.memory_space<vmem>>, vector<1x32xf32>
    %c0_5 = arith.constant 0 : index
    %c0_6 = arith.constant 0 : index
    %5 = vector.load %arg5[%c0_5, %c0_6] : memref<1x32xf32, #tpu.memory_space<vmem>>, vector<1x32xf32>
    %cst_7 = arith.constant dense<0.000000e+00> : vector<128xf32>
    %6 = vector.multi_reduction <add>, %3, %cst_7 [1] : vector<128x32xf32> to vector<128xf32>
    %7 = vector.shape_cast %6 : vector<128xf32> to vector<128x1xf32>
    %cst_8 = arith.constant 3.200000e+01 : f32
    %8 = vector.broadcast %cst_8 : f32 to vector<128x1xf32>
    %9 = arith.divf %7, %8 : vector<128x1xf32>
    %10 = vector.broadcast %9 : vector<128x1xf32> to vector<128x32xf32>
    %11 = arith.subf %3, %10 : vector<128x32xf32>
    %12 = arith.mulf %11, %11 : vector<128x32xf32>
    %cst_9 = arith.constant dense<0.000000e+00> : vector<128xf32>
    %13 = vector.multi_reduction <add>, %12, %cst_9 [1] : vector<128x32xf32> to vector<128xf32>
    %14 = vector.shape_cast %13 : vector<128xf32> to vector<128x1xf32>
    %cst_10 = arith.constant 3.200000e+01 : f32
    %15 = vector.broadcast %cst_10 : f32 to vector<128x1xf32>
    %16 = arith.divf %14, %15 : vector<128x1xf32>
    %17 = vector.broadcast %9 : vector<128x1xf32> to vector<128x32xf32>
    %18 = arith.subf %3, %17 : vector<128x32xf32>
    %cst_11 = arith.constant 9.99999974E-6 : f32
    %19 = vector.broadcast %cst_11 : f32 to vector<128x1xf32>
    %20 = arith.addf %16, %19 : vector<128x1xf32>
    %21 = math.rsqrt %20 : vector<128x1xf32>
    %22 = vector.broadcast %21 : vector<128x1xf32> to vector<128x32xf32>
    %23 = arith.mulf %18, %22 : vector<128x32xf32>
    %24 = vector.broadcast %4 : vector<1x32xf32> to vector<128x32xf32>
    %25 = arith.mulf %23, %24 : vector<128x32xf32>
    %26 = vector.broadcast %5 : vector<1x32xf32> to vector<128x32xf32>
    %27 = arith.addf %25, %26 : vector<128x32xf32>
    %c0_12 = arith.constant 0 : index
    %c0_13 = arith.constant 0 : index
    %28 = vector.load %arg2[%c0_12, %c0_13] : memref<128x32xf32, #tpu.memory_space<vmem>>, vector<128x32xf32>
    %c0_14 = arith.constant 0 : index
    %c0_15 = arith.constant 0 : index
    %29 = vector.load %arg6[%c0_14, %c0_15] : memref<1x32xf32, #tpu.memory_space<vmem>>, vector<1x32xf32>
    %30 = vector.broadcast %29 : vector<1x32xf32> to vector<128x32xf32>
    %31 = arith.subf %30, %27 : vector<128x32xf32>
    %32 = arith.mulf %28, %31 : vector<128x32xf32>
    %33 = arith.addf %27, %32 : vector<128x32xf32>
    %c0_16 = arith.constant 0 : index
    %c0_17 = arith.constant 0 : index
    %34 = vector.load %arg7[%c0_16, %c0_17] : memref<128x32xf32, #tpu.memory_space<vmem>>, vector<128x32xf32>
    tpu.vector_store %arg7[%c0_16, %c0_17], %33 {strides = array<i32>} : memref<128x32xf32, #tpu.memory_space<vmem>>, vector<128x32xf32>,
    return
  }
  func.func @transform_0(%arg0: i32) -> (i32, i32) {
    %c0_i32 = arith.constant 0 : i32
    %c0_i32_0 = arith.constant 0 : i32
    %c0_i32_1 = arith.constant 0 : i32
    return %c0_i32, %c0_i32_0 : i32, i32
  }
  func.func @transform_1(%arg0: i32) -> (i32, i32) {
    %c0_i32 = arith.constant 0 : i32
    %c0_i32_0 = arith.constant 0 : i32
    %c0_i32_1 = arith.constant 0 : i32
    return %c0_i32, %c0_i32_0 : i32, i32
  }
  func.func @transform_2(%arg0: i32) -> (i32, i32) {
    %c0_i32 = arith.constant 0 : i32
    %c0_i32_0 = arith.constant 0 : i32
    %c0_i32_1 = arith.constant 0 : i32
    return %c0_i32, %c0_i32_0 : i32, i32
  }
  func.func @transform_3(%arg0: i32) -> (i32, i32) {
    %c0_i32 = arith.constant 0 : i32
    %c0_i32_0 = arith.constant 0 : i32
    %c0_i32_1 = arith.constant 0 : i32
    return %c0_i32, %c0_i32_0 : i32, i32
  }
  func.func @transform_4(%arg0: i32) -> (i32, i32) {
    %c0_i32 = arith.constant 0 : i32
    %c0_i32_0 = arith.constant 0 : i32
    %c0_i32_1 = arith.constant 0 : i32
    return %c0_i32, %c0_i32_0 : i32, i32
  }
  func.func @transform_5(%arg0: i32) -> (i32, i32) {
    %c0_i32 = arith.constant 0 : i32
    %c0_i32_0 = arith.constant 0 : i32
    %c0_i32_1 = arith.constant 0 : i32
    return %c0_i32, %c0_i32_0 : i32, i32
  }
  func.func @transform_6(%arg0: i32) -> (i32, i32) {
    %c0_i32 = arith.constant 0 : i32
    %c0_i32_0 = arith.constant 0 : i32
    %c0_i32_1 = arith.constant 0 : i32
    return %c0_i32, %c0_i32_0 : i32, i32
  }
}

</mosaic_0001>

<llo_original>
// kernel: tpu_custom_call.1
$region0: #{tpu_custom_call.1}
  #allocation0 [shape = 'u32[]', space=smem, size = 0x4, offset = 0x4, fixed_abs, tag = 'smem constant byte address 0x4 - core index']
  #allocation1 [shape = 'u32[144,128]{1,0:T(1,128)}', space=vmem, size = 0x12000, scoped, tag = 'internal scratch']
  %s0 = inlined_call_operand.vmem [shape: f32[128,16], index: 0, kind: input, shape index: {}]
  %s1 = inlined_call_operand.vmem [shape: f32[128,32], index: 1, kind: input, shape index: {}]
  %s2 = inlined_call_operand.vmem [shape: bf16[16,32], index: 2, kind: input, shape index: {}]
  %s3 = inlined_call_operand.vmem [shape: f32[1,32], index: 3, kind: input, shape index: {}]
  %s4 = inlined_call_operand.vmem [shape: f32[1,32], index: 4, kind: input, shape index: {}]
  %s5 = inlined_call_operand.vmem [shape: f32[1,32], index: 5, kind: input, shape index: {}]
  %s6 = inlined_call_operand.vmem [shape: f32[128,32], index: 6, kind: output, shape index: {}]
  %s7 = sld [smem:[#allocation0]]
  $region34: #{tpu_custom_call.1} parent=0
    _
  %s9 = ssub.s32 1, %s7
  %s10 = scalar_select 0, %s9, %s7
  // Predicated region
  $region2: #{tpu_custom_call.1} parent=0 // pred_check
    _
  $region3: #{tpu_custom_call.1} parent=0 // pred_check_branch
    %12 = sbr.rel (0) target = $region5
  $region4: #{tpu_custom_call.1} parent=0 // pred_region
    _
  $region5: #{tpu_custom_call.1} parent=0 // pred_fallthru
    _
  // Predicated region
  $region6: #{tpu_custom_call.1} parent=0 // pred_check
    _
  $region7: #{tpu_custom_call.1} parent=0 // pred_check_branch
    %14 = sbr.rel (0) target = $region9
  $region8: #{tpu_custom_call.1} parent=0 // pred_region
    _
  $region9: #{tpu_custom_call.1} parent=0 // pred_fallthru
    _
  // Predicated region
  $region10: #{tpu_custom_call.1} parent=0 // pred_check
    _
  $region11: #{tpu_custom_call.1} parent=0 // pred_check_branch
    %16 = sbr.rel (0) target = $region13
  $region12: #{tpu_custom_call.1} parent=0 // pred_region
    _
  $region13: #{tpu_custom_call.1} parent=0 // pred_fallthru
    _
  // Predicated region
  $region14: #{tpu_custom_call.1} parent=0 // pred_check
    _
  $region15: #{tpu_custom_call.1} parent=0 // pred_check_branch
    %18 = sbr.rel (0) target = $region17
  $region16: #{tpu_custom_call.1} parent=0 // pred_region
    _
  $region17: #{tpu_custom_call.1} parent=0 // pred_fallthru
    _
  // Predicated region
  $region18: #{tpu_custom_call.1} parent=0 // pred_check
    _
  $region19: #{tpu_custom_call.1} parent=0 // pred_check_branch
    %20 = sbr.rel (0) target = $region21
  $region20: #{tpu_custom_call.1} parent=0 // pred_region
    _
  $region21: #{tpu_custom_call.1} parent=0 // pred_fallthru
    _
  // Predicated region
  $region22: #{tpu_custom_call.1} parent=0 // pred_check
    _
  $region23: #{tpu_custom_call.1} parent=0 // pred_check_branch
    %22 = sbr.rel (0) target = $region25
  $region24: #{tpu_custom_call.1} parent=0 // pred_region
    _
  $region25: #{tpu_custom_call.1} parent=0 // pred_fallthru
    _
  %v24 = vld [vmem:[%s0] sm:$0xff]
  %v25 = vld [vmem:[%s0 + $0x8] sm:$0xff]
  %v26 = vld [vmem:[%s0 + $0x10] sm:$0xff]
  %v27 = vld [vmem:[%s0 + $0x18] sm:$0xff]
  %v28 = vld [vmem:[%s0 + $0x20] sm:$0xff]
  %v29 = vld [vmem:[%s0 + $0x28] sm:$0xff]
  %v30 = vld [vmem:[%s0 + $0x30] sm:$0xff]
  %v31 = vld [vmem:[%s0 + $0x38] sm:$0xff]
  %v32 = vld [vmem:[%s0 + $0x40] sm:$0xff]
  %v33 = vld [vmem:[%s0 + $0x48] sm:$0xff]
  %v34 = vld [vmem:[%s0 + $0x50] sm:$0xff]
  %v35 = vld [vmem:[%s0 + $0x58] sm:$0xff]
  %v36 = vld [vmem:[%s0 + $0x60] sm:$0xff]
  %v37 = vld [vmem:[%s0 + $0x68] sm:$0xff]
  %v38 = vld [vmem:[%s0 + $0x70] sm:$0xff]
  %v39 = vld [vmem:[%s0 + $0x78] sm:$0xff]
  %v40 = vpack.c.bf16 %v25, %v24
  %v41 = vpack.c.bf16 %v27, %v26
  %v42 = vpack.c.bf16 %v29, %v28
  %v43 = vpack.c.bf16 %v31, %v30
  %v44 = vpack.c.bf16 %v33, %v32
  %v45 = vpack.c.bf16 %v35, %v34
  %v46 = vpack.c.bf16 %v37, %v36
  %v47 = vpack.c.bf16 %v39, %v38
  %v48 = vld [vmem:[%s2] sm:$0xf]
  %v49 = vld [vmem:[%s2 + $0x4] sm:$0xf]
  %v52 = vunpack.c.l.b16 %v48
  %v53 = vunpack.c.l.b16 %v49
  %v54 = vpack.c.b16 %v53, %v52
  %vm56 = vcmask 130048
  %v58 = vsel %vm56, %v40, 0
  %v61 = vsel %vm56, %v41, 0
  %v64 = vsel %vm56, %v42, 0
  %v67 = vsel %vm56, %v43, 0
  %v70 = vsel %vm56, %v44, 0
  %v73 = vsel %vm56, %v45, 0
  %v76 = vsel %vm56, %v46, 0
  %v79 = vsel %vm56, %v47, 0
  %81 = vmatprep.subr.bf16.mxu0 0
  %82 = vmatpush1.bf16.msra.mxu0 %v54
  %83 = vmatprep.subr.bf16.mxu0 0
  %84 = vmatpush1.bf16.msra.mxu0 0
  %85 = vmatprep.subr.bf16.mxu0 0
  %86 = vmatpush1.bf16.msra.mxu0 0
  %87 = vmatprep.subr.bf16.mxu0 0
  %88 = vmatpush1.bf16.msra.mxu0 0
  %89 = vmatprep.subr.bf16.mxu0 0
  %90 = vmatpush1.bf16.msra.mxu0 0
  %91 = vmatprep.subr.bf16.mxu0 0
  %92 = vmatpush1.bf16.msra.mxu0 0
  %93 = vmatprep.subr.bf16.mxu0 0
  %94 = vmatpush1.bf16.msra.mxu0 0
  %95 = vmatprep.subr.bf16.mxu0 0
  %96 = vmatpush1.bf16.msra.mxu0 0
  %97 = vmatprep.subr.bf16.mxu0 0
  %98 = vmatpush1.bf16.msra.mxu0 0
  %99 = vmatprep.subr.bf16.mxu0 0
  %100 = vmatpush1.bf16.msra.mxu0 0
  %101 = vmatprep.subr.bf16.mxu0 0
  %102 = vmatpush1.bf16.msra.mxu0 0
  %103 = vmatprep.subr.bf16.mxu0 0
  %104 = vmatpush1.bf16.msra.mxu0 0
  %105 = vmatprep.subr.bf16.mxu0 0
  %106 = vmatpush1.bf16.msra.mxu0 0
  %107 = vmatprep.subr.bf16.mxu0 0
  %108 = vmatpush1.bf16.msra.mxu0 0
  %109 = vmatprep.subr.bf16.mxu0 0
  %110 = vmatpush1.bf16.msra.mxu0 0
  %111 = vmatprep.subr.bf16.mxu0 0
  %112 = vmatpush1.bf16.msra.mxu0 0
  %113 = vmatprep.mubr.bf16.mxu0 0
  %114 = vmatmul.mubr.bf16.gmra.mrb[0].mxu0 %v58
  %v115 = vpop.f32.mrb[0].mxu0
  %v116 = vadd.f32 0.0, %v115
  %v117 = vpop.f32.mrb[0].mxu0
  %v118 = vpop.f32.mrb[0].mxu0
  %v119 = vadd.f32 0.0, %v118
  %v120 = vpop.f32.mrb[0].mxu0
  %121 = vmatprep.mubr.bf16.mxu0 0
  %122 = vmatmul.mubr.bf16.gmra.mrb[0].mxu0 %v61
  %v123 = vpop.f32.mrb[0].mxu0
  %v124 = vadd.f32 0.0, %v123
  %v125 = vpop.f32.mrb[0].mxu0
  %v126 = vpop.f32.mrb[0].mxu0
  %v127 = vadd.f32 0.0, %v126
  %v128 = vpop.f32.mrb[0].mxu0
  %129 = vmatprep.mubr.bf16.mxu0 0
  %130 = vmatmul.mubr.bf16.gmra.mrb[0].mxu0 %v64
  %v131 = vpop.f32.mrb[0].mxu0
  %v132 = vadd.f32 0.0, %v131
  %v133 = vpop.f32.mrb[0].mxu0
  %v134 = vpop.f32.mrb[0].mxu0
  %v135 = vadd.f32 0.0, %v134
  %v136 = vpop.f32.mrb[0].mxu0
  %137 = vmatprep.mubr.bf16.mxu0 0
  %138 = vmatmul.mubr.bf16.gmra.mrb[0].mxu0 %v67
  %v139 = vpop.f32.mrb[0].mxu0
  %v140 = vadd.f32 0.0, %v139
  %v141 = vpop.f32.mrb[0].mxu0
  %v142 = vpop.f32.mrb[0].mxu0
  %v143 = vadd.f32 0.0, %v142
  %v144 = vpop.f32.mrb[0].mxu0
  %145 = vmatprep.mubr.bf16.mxu0 0
  %146 = vmatmul.mubr.bf16.gmra.mrb[0].mxu0 %v70
  %v147 = vpop.f32.mrb[0].mxu0
  %v148 = vadd.f32 0.0, %v147
  %v149 = vpop.f32.mrb[0].mxu0
  %v150 = vpop.f32.mrb[0].mxu0
  %v151 = vadd.f32 0.0, %v150
  %v152 = vpop.f32.mrb[0].mxu0
  %153 = vmatprep.mubr.bf16.mxu0 0
  %154 = vmatmul.mubr.bf16.gmra.mrb[0].mxu0 %v73
  %v155 = vpop.f32.mrb[0].mxu0
  %v156 = vadd.f32 0.0, %v155
  %v157 = vpop.f32.mrb[0].mxu0
  %v158 = vpop.f32.mrb[0].mxu0
  %v159 = vadd.f32 0.0, %v158
  %v160 = vpop.f32.mrb[0].mxu0
  %161 = vmatprep.mubr.bf16.mxu0 0
  %162 = vmatmul.mubr.bf16.gmra.mrb[0].mxu0 %v76
  %v163 = vpop.f32.mrb[0].mxu0
  %v164 = vadd.f32 0.0, %v163
  %v165 = vpop.f32.mrb[0].mxu0
  %v166 = vpop.f32.mrb[0].mxu0
  %v167 = vadd.f32 0.0, %v166
  %v168 = vpop.f32.mrb[0].mxu0
  %169 = vmatprep.mubr.bf16.mxu0 0
  %170 = vmatmul.mubr.bf16.gmra.mrb[0].mxu0 %v79
  %v171 = vpop.f32.mrb[0].mxu0
  %v172 = vadd.f32 0.0, %v171
  %v173 = vpop.f32.mrb[0].mxu0
  %v174 = vpop.f32.mrb[0].mxu0
  %v175 = vadd.f32 0.0, %v174
  %v176 = vpop.f32.mrb[0].mxu0
  %177 = vdwg.mxu0
  %v178 = vld [vmem:[%s3] sm:$0x1]
  %v179 = vld [vmem:[%s4] sm:$0x1]
  %vm180 = vcmask 261120
  %v181 = vsel %vm180, %v116, 0.0
  %182 = vadd.xlane.f32.xlu0 %v181
  %v183 = vpop.xlane.xlu0 %182
  %v184 = vsel %vm180, %v119, 0.0
  %185 = vadd.xlane.f32.xlu0 %v184
  %v186 = vpop.xlane.xlu0 %185
  %v187 = vsel %vm180, %v124, 0.0
  %188 = vadd.xlane.f32.xlu0 %v187
  %v189 = vpop.xlane.xlu0 %188
  %v190 = vsel %vm180, %v127, 0.0
  %191 = vadd.xlane.f32.xlu0 %v190
  %v192 = vpop.xlane.xlu0 %191
  %v193 = vsel %vm180, %v132, 0.0
  %194 = vadd.xlane.f32.xlu0 %v193
  %v195 = vpop.xlane.xlu0 %194
  %v196 = vsel %vm180, %v135, 0.0
  %197 = vadd.xlane.f32.xlu0 %v196
  %v198 = vpop.xlane.xlu0 %197
  %v199 = vsel %vm180, %v140, 0.0
  %200 = vadd.xlane.f32.xlu0 %v199
  %v201 = vpop.xlane.xlu0 %200
  %v202 = vsel %vm180, %v143, 0.0
  %203 = vadd.xlane.f32.xlu0 %v202
  %v204 = vpop.xlane.xlu0 %203
  %v205 = vsel %vm180, %v148, 0.0
  %206 = vadd.xlane.f32.xlu0 %v205
  %v207 = vpop.xlane.xlu0 %206
  %v208 = vsel %vm180, %v151, 0.0
  %209 = vadd.xlane.f32.xlu0 %v208
  %v210 = vpop.xlane.xlu0 %209
  %v211 = vsel %vm180, %v156, 0.0
  %212 = vadd.xlane.f32.xlu0 %v211
  %v213 = vpop.xlane.xlu0 %212
  %v214 = vsel %vm180, %v159, 0.0
  %215 = vadd.xlane.f32.xlu0 %v214
  %v216 = vpop.xlane.xlu0 %215
  %v217 = vsel %vm180, %v164, 0.0
  %218 = vadd.xlane.f32.xlu0 %v217
  %v219 = vpop.xlane.xlu0 %218
  %v220 = vsel %vm180, %v167, 0.0
  %221 = vadd.xlane.f32.xlu0 %v220
  %v222 = vpop.xlane.xlu0 %221
  %v223 = vsel %vm180, %v172, 0.0
  %224 = vadd.xlane.f32.xlu0 %v223
  %v225 = vpop.xlane.xlu0 %224
  %v226 = vsel %vm180, %v175, 0.0
  %227 = vadd.xlane.f32.xlu0 %v226
  %v228 = vpop.xlane.xlu0 %227
  %v229 = vrcp.pop 32.0
  %v230 = vmul.f32 %v183, %v229
  %v231 = vmul.f32 %v186, %v229
  %v232 = vmul.f32 %v189, %v229
  %v233 = vmul.f32 %v192, %v229
  %v234 = vmul.f32 %v195, %v229
  %v235 = vmul.f32 %v198, %v229
  %v236 = vmul.f32 %v201, %v229
  %v237 = vmul.f32 %v204, %v229
  %v238 = vmul.f32 %v207, %v229
  %v239 = vmul.f32 %v210, %v229
  %v240 = vmul.f32 %v213, %v229
  %v241 = vmul.f32 %v216, %v229
  %v242 = vmul.f32 %v219, %v229
  %v243 = vmul.f32 %v222, %v229
  %v244 = vmul.f32 %v225, %v229
  %v245 = vmul.f32 %v228, %v229
  %v246 = vsub.f32 %v116, %v230
  %v247 = vsub.f32 %v119, %v231
  %v248 = vsub.f32 %v124, %v232
  %v249 = vsub.f32 %v127, %v233
  %v250 = vsub.f32 %v132, %v234
  %v251 = vsub.f32 %v135, %v235
  %v252 = vsub.f32 %v140, %v236
  %v253 = vsub.f32 %v143, %v237
  %v254 = vsub.f32 %v148, %v238
  %v255 = vsub.f32 %v151, %v239
  %v256 = vsub.f32 %v156, %v240
  %v257 = vsub.f32 %v159, %v241
  %v258 = vsub.f32 %v164, %v242
  %v259 = vsub.f32 %v167, %v243
  %v260 = vsub.f32 %v172, %v244
  %v261 = vsub.f32 %v175, %v245
  %v262 = vmul.f32 %v246, %v246
  %v263 = vmul.f32 %v247, %v247
  %v264 = vmul.f32 %v248, %v248
  %v265 = vmul.f32 %v249, %v249
  %v266 = vmul.f32 %v250, %v250
  %v267 = vmul.f32 %v251, %v251
  %v268 = vmul.f32 %v252, %v252
  %v269 = vmul.f32 %v253, %v253
  %v270 = vmul.f32 %v254, %v254
  %v271 = vmul.f32 %v255, %v255
  %v272 = vmul.f32 %v256, %v256
  %v273 = vmul.f32 %v257, %v257
  %v274 = vmul.f32 %v258, %v258
  %v275 = vmul.f32 %v259, %v259
  %v276 = vmul.f32 %v260, %v260
  %v277 = vmul.f32 %v261, %v261
  %v278 = vsel %vm180, %v262, 0.0
  %279 = vadd.xlane.f32.xlu0 %v278
  %v280 = vpop.xlane.xlu0 %279
  %v281 = vsel %vm180, %v263, 0.0
  %282 = vadd.xlane.f32.xlu0 %v281
  %v283 = vpop.xlane.xlu0 %282
  %v284 = vsel %vm180, %v264, 0.0
  %285 = vadd.xlane.f32.xlu0 %v284
  %v286 = vpop.xlane.xlu0 %285
  %v287 = vsel %vm180, %v265, 0.0
  %288 = vadd.xlane.f32.xlu0 %v287
  %v289 = vpop.xlane.xlu0 %288
  %v290 = vsel %vm180, %v266, 0.0
  %291 = vadd.xlane.f32.xlu0 %v290
  %v292 = vpop.xlane.xlu0 %291
  %v293 = vsel %vm180, %v267, 0.0
  %294 = vadd.xlane.f32.xlu0 %v293
  %v295 = vpop.xlane.xlu0 %294
  %v296 = vsel %vm180, %v268, 0.0
  %297 = vadd.xlane.f32.xlu0 %v296
  %v298 = vpop.xlane.xlu0 %297
  %v299 = vsel %vm180, %v269, 0.0
  %300 = vadd.xlane.f32.xlu0 %v299
  %v301 = vpop.xlane.xlu0 %300
  %v302 = vsel %vm180, %v270, 0.0
  %303 = vadd.xlane.f32.xlu0 %v302
  %v304 = vpop.xlane.xlu0 %303
  %v305 = vsel %vm180, %v271, 0.0
  %306 = vadd.xlane.f32.xlu0 %v305
  %v307 = vpop.xlane.xlu0 %306
  %v308 = vsel %vm180, %v272, 0.0
  %309 = vadd.xlane.f32.xlu0 %v308
  %v310 = vpop.xlane.xlu0 %309
  %v311 = vsel %vm180, %v273, 0.0
  %312 = vadd.xlane.f32.xlu0 %v311
  %v313 = vpop.xlane.xlu0 %312
  %v314 = vsel %vm180, %v274, 0.0
  %315 = vadd.xlane.f32.xlu0 %v314
  %v316 = vpop.xlane.xlu0 %315
  %v317 = vsel %vm180, %v275, 0.0
  %318 = vadd.xlane.f32.xlu0 %v317
  %v319 = vpop.xlane.xlu0 %318
  %v320 = vsel %vm180, %v276, 0.0
  %321 = vadd.xlane.f32.xlu0 %v320
  %v322 = vpop.xlane.xlu0 %321
  %v323 = vsel %vm180, %v277, 0.0
  %324 = vadd.xlane.f32.xlu0 %v323
  %v325 = vpop.xlane.xlu0 %324
  %v326 = vmul.f32 %v280, %v229
  %v327 = vmul.f32 %v283, %v229
  %v328 = vmul.f32 %v286, %v229
  %v329 = vmul.f32 %v289, %v229
  %v330 = vmul.f32 %v292, %v229
  %v331 = vmul.f32 %v295, %v229
  %v332 = vmul.f32 %v298, %v229
  %v333 = vmul.f32 %v301, %v229
  %v334 = vmul.f32 %v304, %v229
  %v335 = vmul.f32 %v307, %v229
  %v336 = vmul.f32 %v310, %v229
  %v337 = vmul.f32 %v313, %v229
  %v338 = vmul.f32 %v316, %v229
  %v339 = vmul.f32 %v319, %v229
  %v340 = vmul.f32 %v322, %v229
  %v341 = vmul.f32 %v325, %v229
  %v342 = vadd.f32 %v326, 1e-05
  %v343 = vadd.f32 %v327, 1e-05
  %v344 = vadd.f32 %v328, 1e-05
  %v345 = vadd.f32 %v329, 1e-05
  %v346 = vadd.f32 %v330, 1e-05
  %v347 = vadd.f32 %v331, 1e-05
  %v348 = vadd.f32 %v332, 1e-05
  %v349 = vadd.f32 %v333, 1e-05
  %v350 = vadd.f32 %v334, 1e-05
  %v351 = vadd.f32 %v335, 1e-05
  %v352 = vadd.f32 %v336, 1e-05
  %v353 = vadd.f32 %v337, 1e-05
  %v354 = vadd.f32 %v338, 1e-05
  %v355 = vadd.f32 %v339, 1e-05
  %v356 = vadd.f32 %v340, 1e-05
  %v357 = vadd.f32 %v341, 1e-05
  %v358 = vrsqrt.pop %v342
  %v359 = vrsqrt.pop %v343
  %v360 = vrsqrt.pop %v344
  %v361 = vrsqrt.pop %v345
  %v362 = vrsqrt.pop %v346
  %v363 = vrsqrt.pop %v347
  %v364 = vrsqrt.pop %v348
  %v365 = vrsqrt.pop %v349
  %v366 = vrsqrt.pop %v350
  %v367 = vrsqrt.pop %v351
  %v368 = vrsqrt.pop %v352
  %v369 = vrsqrt.pop %v353
  %v370 = vrsqrt.pop %v354
  %v371 = vrsqrt.pop %v355
  %v372 = vrsqrt.pop %v356
  %v373 = vrsqrt.pop %v357
  %v374 = vmul.f32 %v246, %v358
  %v375 = vmul.f32 %v247, %v359
  %v376 = vmul.f32 %v248, %v360
  %v377 = vmul.f32 %v249, %v361
  %v378 = vmul.f32 %v250, %v362
  %v379 = vmul.f32 %v251, %v363
  %v380 = vmul.f32 %v252, %v364
  %v381 = vmul.f32 %v253, %v365
  %v382 = vmul.f32 %v254, %v366
  %v383 = vmul.f32 %v255, %v367
  %v384 = vmul.f32 %v256, %v368
  %v385 = vmul.f32 %v257, %v369
  %v386 = vmul.f32 %v258, %v370
  %v387 = vmul.f32 %v259, %v371
  %v388 = vmul.f32 %v260, %v372
  %v389 = vmul.f32 %v261, %v373
  %v391 = vlaneseq
  %v392 = vshrl.u32 %v391, 7
  %v393 = vsub.s32 0, %v392
  %v394 = vrot.slane %v178, %v393
  %v396 = vmul.f32 %v374, %v394
  %v397 = vmul.f32 %v375, %v394
  %v398 = vmul.f32 %v376, %v394
  %v399 = vmul.f32 %v377, %v394
  %v400 = vmul.f32 %v378, %v394
  %v401 = vmul.f32 %v379, %v394
  %v402 = vmul.f32 %v380, %v394
  %v403 = vmul.f32 %v381, %v394
  %v404 = vmul.f32 %v382, %v394
  %v405 = vmul.f32 %v383, %v394
  %v406 = vmul.f32 %v384, %v394
  %v407 = vmul.f32 %v385, %v394
  %v408 = vmul.f32 %v386, %v394
  %v409 = vmul.f32 %v387, %v394
  %v410 = vmul.f32 %v388, %v394
  %v411 = vmul.f32 %v389, %v394
  %v413 = vlaneseq
  %v414 = vshrl.u32 %v413, 7
  %v415 = vsub.s32 0, %v414
  %v416 = vrot.slane %v179, %v415
  %v418 = vadd.f32 %v396, %v416
  %v419 = vadd.f32 %v397, %v416
  %v420 = vadd.f32 %v398, %v416
  %v421 = vadd.f32 %v399, %v416
  %v422 = vadd.f32 %v400, %v416
  %v423 = vadd.f32 %v401, %v416
  %v424 = vadd.f32 %v402, %v416
  %v425 = vadd.f32 %v403, %v416
  %v426 = vadd.f32 %v404, %v416
  %v427 = vadd.f32 %v405, %v416
  %v428 = vadd.f32 %v406, %v416
  %v429 = vadd.f32 %v407, %v416
  %v430 = vadd.f32 %v408, %v416
  %v431 = vadd.f32 %v409, %v416
  %v432 = vadd.f32 %v410, %v416
  %v433 = vadd.f32 %v411, %v416
  %v434 = vld [vmem:[%s1] sm:$0xff]
  %v435 = vld [vmem:[%s1 + $0x8] sm:$0xff]
  %v436 = vld [vmem:[%s1 + $0x10] sm:$0xff]
  %v437 = vld [vmem:[%s1 + $0x18] sm:$0xff]
  %v438 = vld [vmem:[%s1 + $0x20] sm:$0xff]
  %v439 = vld [vmem:[%s1 + $0x28] sm:$0xff]
  %v440 = vld [vmem:[%s1 + $0x30] sm:$0xff]
  %v441 = vld [vmem:[%s1 + $0x38] sm:$0xff]
  %v442 = vld [vmem:[%s1 + $0x40] sm:$0xff]
  %v443 = vld [vmem:[%s1 + $0x48] sm:$0xff]
  %v444 = vld [vmem:[%s1 + $0x50] sm:$0xff]
  %v445 = vld [vmem:[%s1 + $0x58] sm:$0xff]
  %v446 = vld [vmem:[%s1 + $0x60] sm:$0xff]
  %v447 = vld [vmem:[%s1 + $0x68] sm:$0xff]
  %v448 = vld [vmem:[%s1 + $0x70] sm:$0xff]
  %v449 = vld [vmem:[%s1 + $0x78] sm:$0xff]
  %v450 = vld [vmem:[%s5] sm:$0x1]
  %v452 = vlaneseq
  %v453 = vshrl.u32 %v452, 7
  %v454 = vsub.s32 0, %v453
  %v455 = vrot.slane %v450, %v454
  %v457 = vsub.f32 %v455, %v418
  %v458 = vsub.f32 %v455, %v419
  %v459 = vsub.f32 %v455, %v420
  %v460 = vsub.f32 %v455, %v421
  %v461 = vsub.f32 %v455, %v422
  %v462 = vsub.f32 %v455, %v423
  %v463 = vsub.f32 %v455, %v424
  %v464 = vsub.f32 %v455, %v425
  %v465 = vsub.f32 %v455, %v426
  %v466 = vsub.f32 %v455, %v427
  %v467 = vsub.f32 %v455, %v428
  %v468 = vsub.f32 %v455, %v429
  %v469 = vsub.f32 %v455, %v430
  %v470 = vsub.f32 %v455, %v431
  %v471 = vsub.f32 %v455, %v432
  %v472 = vsub.f32 %v455, %v433
  %v473 = vmul.f32 %v434, %v457
  %v474 = vmul.f32 %v435, %v458
  %v475 = vmul.f32 %v436, %v459
  %v476 = vmul.f32 %v437, %v460
  %v477 = vmul.f32 %v438, %v461
  %v478 = vmul.f32 %v439, %v462
  %v479 = vmul.f32 %v440, %v463
  %v480 = vmul.f32 %v441, %v464
  %v481 = vmul.f32 %v442, %v465
  %v482 = vmul.f32 %v443, %v466
  %v483 = vmul.f32 %v444, %v467
  %v484 = vmul.f32 %v445, %v468
  %v485 = vmul.f32 %v446, %v469
  %v486 = vmul.f32 %v447, %v470
  %v487 = vmul.f32 %v448, %v471
  %v488 = vmul.f32 %v449, %v472
  %v489 = vadd.f32 %v418, %v473
  %v490 = vadd.f32 %v419, %v474
  %v491 = vadd.f32 %v420, %v475
  %v492 = vadd.f32 %v421, %v476
  %v493 = vadd.f32 %v422, %v477
  %v494 = vadd.f32 %v423, %v478
  %v495 = vadd.f32 %v424, %v479
  %v496 = vadd.f32 %v425, %v480
  %v497 = vadd.f32 %v426, %v481
  %v498 = vadd.f32 %v427, %v482
  %v499 = vadd.f32 %v428, %v483
  %v500 = vadd.f32 %v429, %v484
  %v501 = vadd.f32 %v430, %v485
  %v502 = vadd.f32 %v431, %v486
  %v503 = vadd.f32 %v432, %v487
  %v504 = vadd.f32 %v433, %v488
  %505 = vst.msk [vmem:[%s6] sm:$0xff] %vm180, %v489
  %506 = vst.msk [vmem:[%s6 + $0x8] sm:$0xff] %vm180, %v490
  %507 = vst.msk [vmem:[%s6 + $0x10] sm:$0xff] %vm180, %v491
  %508 = vst.msk [vmem:[%s6 + $0x18] sm:$0xff] %vm180, %v492
  %509 = vst.msk [vmem:[%s6 + $0x20] sm:$0xff] %vm180, %v493
  %510 = vst.msk [vmem:[%s6 + $0x28] sm:$0xff] %vm180, %v494
  %511 = vst.msk [vmem:[%s6 + $0x30] sm:$0xff] %vm180, %v495
  %512 = vst.msk [vmem:[%s6 + $0x38] sm:$0xff] %vm180, %v496
  %513 = vst.msk [vmem:[%s6 + $0x40] sm:$0xff] %vm180, %v497
  %514 = vst.msk [vmem:[%s6 + $0x48] sm:$0xff] %vm180, %v498
  %515 = vst.msk [vmem:[%s6 + $0x50] sm:$0xff] %vm180, %v499
  %516 = vst.msk [vmem:[%s6 + $0x58] sm:$0xff] %vm180, %v500
  %517 = vst.msk [vmem:[%s6 + $0x60] sm:$0xff] %vm180, %v501
  %518 = vst.msk [vmem:[%s6 + $0x68] sm:$0xff] %vm180, %v502
  %519 = vst.msk [vmem:[%s6 + $0x70] sm:$0xff] %vm180, %v503
  %520 = vst.msk [vmem:[%s6 + $0x78] sm:$0xff] %vm180, %v504
  // Predicated region
  $region26: #{tpu_custom_call.1} parent=0 // pred_check
    _
  $region27: #{tpu_custom_call.1} parent=0 // pred_check_branch
    %522 = sbr.rel (0) target = $region29
  $region28: #{tpu_custom_call.1} parent=0 // pred_region
    _
  $region29: #{tpu_custom_call.1} parent=0 // pred_fallthru
    _
  // Predicated region
  $region30: #{tpu_custom_call.1} parent=0 // pred_check
    _
  $region31: #{tpu_custom_call.1} parent=0 // pred_check_branch
    %524 = sbr.rel (0) target = $region33
  $region32: #{tpu_custom_call.1} parent=0 // pred_region
    _
  $region33: #{tpu_custom_call.1} parent=0 // pred_fallthru
    _

</llo_original>
